<compile_context>
chip_gen: v7x
topology: tpu7x:2x2x1
jax: 0.10.0
libtpu: 0.0.40
codegen_flags: <defaults>
</compile_context>

<pallas_src>
import jax
import jax.numpy as jnp
from jax.experimental import pallas as pl
from jax.experimental.pallas import tpu as pltpu


def _normalize_kernel(x_ref, sb_ref, o_ref):
    # x_ref:  (rows_block, cols_block) tile of the flattened input
    # sb_ref: (rows_block, 2) float32; column 0 = scale, column 1 = bias
    scale = sb_ref[:, 0:1]                      # (rows_block, 1) f32
    bias = sb_ref[:, 1:2]                       # (rows_block, 1) f32
    x = x_ref[...].astype(jnp.float32)
    o_ref[...] = (x * scale + bias).astype(o_ref.dtype)


def _device_tuning():
    """Returns (tile_budget_bytes, has_two_tensorcores)."""
    try:
        kind = jax.devices()[0].device_kind.lower()
    except Exception:  # pragma: no cover - defensive only
        kind = ""
    if "v7" in kind:
        return 8 * 1024 * 1024, True
    return 4 * 1024 * 1024, False


def normalize(x: jax.Array, mean, std, eps: float = 1e-8) -> jax.Array:
    """Pallas implementation of Normalize.forward for NCHW x with per-channel mean/std."""
    N, C, H, W = x.shape
    rows = N * C
    cols = H * W

    # Free (contiguous) reshape: one row per (n, c) image plane.
    x2d = x.reshape(rows, cols)

    # ---- per-row scale/bias, precomputed in float32 (C-length op, negligible) ----
    mean_c = jnp.asarray(mean, dtype=jnp.float32).reshape(C)
    std_c = jnp.asarray(std, dtype=jnp.float32).reshape(C)
    inv = 1.0 / (std_c + jnp.float32(eps))
    scale_c = jnp.where(std_c == 0.0, 0.0, inv)
    bias_c = jnp.where(std_c == 0.0, 0.0, -mean_c * inv)
    # Fused (rows, 2) operand: one small param DMA per row band.
    sb = jnp.stack([jnp.tile(scale_c, N), jnp.tile(bias_c, N)], axis=1)  # (rows, 2) f32

    # ---- tile selection: lane-dense, whole-row-first, cdiv grid ----
    itemsize = x.dtype.itemsize
    sub = {4: 8, 2: 16, 1: 32}.get(itemsize, 8)       # dtype-specific sublane multiple
    target_tile_bytes, two_cores = _device_tuning()

    row_bytes = cols * itemsize
    if cols <= 128 or row_bytes * sub <= target_tile_bytes:
        cols_block = cols                              # whole rows: fully contiguous DMA
    else:
        cols_block = (target_tile_bytes // (sub * itemsize)) // 128 * 128
        cols_block = max(128, min(cols_block, (cols // 128) * 128))

    rows_target = target_tile_bytes // max(1, cols_block * itemsize)
    if rows_target >= rows:
        rows_block = rows                              # full extent is always legal
    else:
        rows_block = max(sub, (rows_target // sub) * sub)

    # v7x has 2 TensorCores: make sure a "parallel" axis has >= 2 grid steps.
    if two_cores and pl.cdiv(rows, rows_block) * pl.cdiv(cols, cols_block) < 2:
        if rows >= 2 * sub:
            rows_block = ((pl.cdiv(rows, 2) + sub - 1) // sub) * sub
        elif cols_block == cols and cols >= 256:
            cols_block = ((pl.cdiv(cols, 2) + 127) // 128) * 128

    grid = (pl.cdiv(rows, rows_block), pl.cdiv(cols, cols_block))

    # VMEM budget: 2 streams (x in, y out) x 2 pipeline buffers x block + headroom.
    block_bytes = rows_block * max(cols_block, 128) * itemsize
    vmem_limit = min(48 * 1024 * 1024, max(16 * 1024 * 1024, 4 * block_bytes + 2 * 1024 * 1024))

    out2d = pl.pallas_call(
        _normalize_kernel,
        out_shape=jax.ShapeDtypeStruct((rows, cols), x.dtype),
        grid=grid,                                     # (i, j): j (columns) innermost
        in_specs=[
            pl.BlockSpec((rows_block, cols_block), lambda i, j: (i, j)),
            pl.BlockSpec((rows_block, 2), lambda i, j: (i, 0)),   # j-invariant: no re-fetch
        ],
        out_specs=pl.BlockSpec((rows_block, cols_block), lambda i, j: (i, j)),
        compiler_params=pltpu.CompilerParams(
            dimension_semantics=("parallel", "parallel"),
            vmem_limit_bytes=vmem_limit,
        ),
    )(x2d, sb)

    return out2d.reshape(N, C, H, W)


if __name__ == "__main__":
    key = jax.random.PRNGKey(0)
    kx, km, ks = jax.random.split(key, 3)

    # Small NCHW input consistent with an image-style Normalize transform.
    x = jax.random.normal(kx, (2, 4, 16, 16), dtype=jnp.float32)
    mean = jax.random.normal(km, (4,), dtype=jnp.float32)
    std = jnp.abs(jax.random.normal(ks, (4,), dtype=jnp.float32)) + 0.5
    std = std.at[2].set(0.0)       # exercise the std == 0 -> 0 branch
    eps = 1e-8

    y = normalize(x, mean, std, eps=eps)
    y = jax.block_until_ready(y)

    # Reference: identical semantics to the PyTorch module with per-channel mean/std.
    mean_b = mean[None, :, None, None]
    std_b = std[None, :, None, None]
    ref = jnp.where(std_b == 0, 0.0, (x - mean_b) / (std_b + eps))

    assert y.shape == x.shape and y.dtype == x.dtype
    assert jnp.max(jnp.abs(y - ref)) < 1e-5

    print("KERNEL_OK")
</pallas_src>

<mosaic_0001>
module attributes {stable_mosaic.version = 11 : i64} {
  func.func @_normalize_kernel(%arg0: i32, %arg1: i32, %arg2: memref<8x256xf32, #tpu.memory_space<vmem>>, %arg3: memref<8x2xf32, #tpu.memory_space<vmem>>, %arg4: memref<8x256xf32, #tpu.memory_space<vmem>>) attributes {dimension_semantics = [#tpu.dimension_semantics<parallel>, #tpu.dimension_semantics<parallel>], iteration_bounds = array<i64: 1, 1>, scalar_prefetch = 0 : i64, scratch_operands = 0 : i64, tpu.core_type = #tpu.core_type<tc>, window_params = [{transform_indices = @transform_0, window_bounds = array<i64: 8, 256>}, {transform_indices = @transform_1, window_bounds = array<i64: 8, 2>}, {transform_indices = @transform_2, window_bounds = array<i64: 8, 256>}]} {
    %c0 = arith.constant 0 : index
    %c0_0 = arith.constant 0 : index
    %0 = vector.load %arg3[%c0, %c0_0] : memref<8x2xf32, #tpu.memory_space<vmem>>, vector<8x1xf32>
    %c0_1 = arith.constant 0 : index
    %c1 = arith.constant 1 : index
    %1 = vector.load %arg3[%c0_1, %c1] : memref<8x2xf32, #tpu.memory_space<vmem>>, vector<8x1xf32>
    %c0_2 = arith.constant 0 : index
    %c0_3 = arith.constant 0 : index
    %2 = vector.load %arg2[%c0_2, %c0_3] : memref<8x256xf32, #tpu.memory_space<vmem>>, vector<8x256xf32>
    %3 = vector.broadcast %0 : vector<8x1xf32> to vector<8x256xf32>
    %4 = arith.mulf %2, %3 : vector<8x256xf32>
    %5 = vector.broadcast %1 : vector<8x1xf32> to vector<8x256xf32>
    %6 = arith.addf %4, %5 : vector<8x256xf32>
    %c0_4 = arith.constant 0 : index
    %c0_5 = arith.constant 0 : index
    %7 = vector.load %arg4[%c0_4, %c0_5] : memref<8x256xf32, #tpu.memory_space<vmem>>, vector<8x256xf32>
    tpu.vector_store %arg4[%c0_4, %c0_5], %6 {strides = array<i32>} : memref<8x256xf32, #tpu.memory_space<vmem>>, vector<8x256xf32>,
    return
  }
  func.func @transform_0(%arg0: i32, %arg1: i32) -> (i32, i32) {
    %c0_i32 = arith.constant 0 : i32
    return %arg0, %arg1 : i32, i32
  }
  func.func @transform_1(%arg0: i32, %arg1: i32) -> (i32, i32) {
    %c0_i32 = arith.constant 0 : i32
    %c0_i32_0 = arith.constant 0 : i32
    return %arg0, %c0_i32 : i32, i32
  }
  func.func @transform_2(%arg0: i32, %arg1: i32) -> (i32, i32) {
    %c0_i32 = arith.constant 0 : i32
    return %arg0, %arg1 : i32, i32
  }
}

</mosaic_0001>

<llo_original>
// kernel: tpu_custom_call.1
$region0: #{tpu_custom_call.1}
  #allocation0 [shape = 'u32[]', space=smem, size = 0x4, offset = 0x4, fixed_abs, tag = 'smem constant byte address 0x4 - core index']
  #allocation1 [shape = 'u32[144,128]{1,0:T(1,128)}', space=vmem, size = 0x12000, scoped, tag = 'internal scratch']
  %s0 = inlined_call_operand.hbm [shape: f32[8,256], index: 0, kind: input, shape index: {}]
  %s1 = inlined_call_operand.vmem [shape: f32[8,2], index: 1, kind: input, shape index: {}]
  %s2 = inlined_call_operand.hbm [shape: f32[8,256], index: 2, kind: output, shape index: {}]
  %s3 = sld [smem:[#allocation0]]
  $region22: #{tpu_custom_call.1} parent=0
    _
  %s5 = ssub.s32 1, %s3
  %s6 = scalar_select 0, %s5, %s3
  $region1: #{tpu_custom_call.1} parent=0
    #allocation2 [shape = 'u8[8192]{0}', space=vmem, size = 0x2000, scoped, tag = 'input window, operand 0, single buffered']
    #allocation3 [shape = 's32[1]{0}', space=sflag, size = 0x4, scoped, tag = 'scoped memory for tpu_custom_call.1']
    #allocation4 [shape = 's32[1]{0}', space=sflag, size = 0x4, scoped, tag = 'scoped memory for tpu_custom_call.1']
    #allocation5 [shape = 'u8[8192]{0}', space=vmem, size = 0x2000, scoped, tag = 'output window, operand 0, single buffered']
    %7 = vsyncpa [#allocation3], 0
    %8 = vsyncpa [#allocation4], 0
    // Predicated region
    $region2: #{tpu_custom_call.1} parent=1 // pred_check
      _
    $region3: #{tpu_custom_call.1} parent=1 // pred_check_branch
      %10 = sbr.rel (0) target = $region5
    $region4: #{tpu_custom_call.1} parent=1 // pred_region
      %s12 = ssub.s32 256, 256
      %13 = vsyncadd [#allocation3], %s12
      %s15 = sshll.u32 [#allocation2], 4
      %s16 = int_to_ptr.vmem [resolvable:$true] %s15
      %18 = dma.hbm_to_vmem [thread:$0]  %s0, 256, %s16, [#allocation3]
    $region5: #{tpu_custom_call.1} parent=1 // pred_fallthru
      _
    // Predicated region
    $region6: #{tpu_custom_call.1} parent=1 // pred_check
      _
    $region7: #{tpu_custom_call.1} parent=1 // pred_check_branch
      %20 = sbr.rel (0) target = $region9
    $region8: #{tpu_custom_call.1} parent=1 // pred_region
      _
    $region9: #{tpu_custom_call.1} parent=1 // pred_fallthru
      _
    // Predicated region
    $region10: #{tpu_custom_call.1} parent=1 // pred_check
      _
    $region11: #{tpu_custom_call.1} parent=1 // pred_check_branch
      %22 = sbr.rel (0) target = $region13
    $region12: #{tpu_custom_call.1} parent=1 // pred_region
      %23 = dma.done [#allocation3], 256
    $region13: #{tpu_custom_call.1} parent=1 // pred_fallthru
      _
    %v24 = vld [vmem:[%s1] sm:$0xff]
    %v25 = vld [vmem:[#allocation2] sm:$0xff]
    %v26 = vld [vmem:[#allocation2 + $0x8] sm:$0xff]
    %28 = vset.pattern.permute.xlu0 0
    %29 = vperm.xlu0 %28, %v24
    %v30 = vpop.permute.xlu0 %29
    %v32 = vmul.f32 %v25, %v30
    %v33 = vmul.f32 %v26, %v30
    %34 = vset.pattern.permute.xlu0 1
    %35 = vperm.xlu0 %34, %v24
    %v36 = vpop.permute.xlu0 %35
    %v38 = vadd.f32 %v32, %v36
    %v39 = vadd.f32 %v33, %v36
    %40 = vst [vmem:[#allocation5] sm:$0xff] %v38
    %41 = vst [vmem:[#allocation5 + $0x8] sm:$0xff] %v39
    // Predicated region
    $region14: #{tpu_custom_call.1} parent=1 // pred_check
      _
    $region15: #{tpu_custom_call.1} parent=1 // pred_check_branch
      %43 = sbr.rel (0) target = $region17
    $region16: #{tpu_custom_call.1} parent=1 // pred_region
      %s45 = ssub.s32 256, 256
      %46 = vsyncadd [#allocation4], %s45
      %s48 = sshll.u32 [#allocation5], 4
      %s49 = int_to_ptr.vmem [resolvable:$true] %s48
      %51 = dma.vmem_to_hbm [thread:$0]  %s49, 256, %s2, [#allocation4]
    $region17: #{tpu_custom_call.1} parent=1 // pred_fallthru
      _
    // Predicated region
    $region18: #{tpu_custom_call.1} parent=1 // pred_check
      _
    $region19: #{tpu_custom_call.1} parent=1 // pred_check_branch
      %53 = sbr.rel (0) target = $region21
    $region20: #{tpu_custom_call.1} parent=1 // pred_region
      %54 = dma.done [#allocation4], 256
    $region21: #{tpu_custom_call.1} parent=1 // pred_fallthru
      _
    %55 = vsyncpa [#allocation3], 1
    %56 = vsyncpa [#allocation4], 1

</llo_original>
